<compile_context>
chip_gen: v6e
topology: v6e:2x2x1
jax: 0.10.0
libtpu: 0.0.40
codegen_flags: <defaults>
</compile_context>

<pallas_src>
import jax
import jax.numpy as jnp
from jax import lax
from jax.experimental import pallas as pl
from jax.experimental.pallas import tpu as pltpu

# ----------------------------- model config ---------------------------------
CATEGORICAL_FEATURES = [10, 7, 12, 5]   # n_categories per feature (F = 4)
EMBEDDING_DIM = 8                        # E
HIDDEN_DIM = 32                          # first Linear out
OUT_DIM = 4                              # second Linear out
BATCH = 256                              # B   (multiple of TILE_B)
TILE_B = 128                             # batch tile per grid step

F = len(CATEGORICAL_FEATURES)
MAXN = max(CATEGORICAL_FEATURES)
CONCAT_DIM = F * EMBEDDING_DIM           # MultipleEmbeddingLayer.out_dim
FUSED_ROWS = F * MAXN                    # width of the block one-hot
OUT_PAD = 128                            # lane-dense padded output width


# ------------------------------ Pallas kernel --------------------------------
def deepnet_kernel(idx_ref, t_ref, b1_ref, w2_ref, b2_ref, out_ref):
    # idx_ref: (TILE_B, F) int32
    # t_ref:   (FUSED_ROWS, HIDDEN) bf16   fused  emb @ W1  table
    # w2_ref:  (HIDDEN, OUT_PAD) bf16
    # b1_ref:  (1, HIDDEN) f32, b2_ref: (1, OUT_PAD) f32
    tb = idx_ref.shape[0]
    idx = idx_ref[...]                                                 # (TILE_B, F)

    # Single hoisted iota over the fused one-hot width.
    cols = lax.broadcasted_iota(jnp.int32, (tb, FUSED_ROWS), 1)        # (TILE_B, F*MAXN)

    # Block one-hot: feature f occupies columns [f*MAXN, (f+1)*MAXN).
    onehot = None
    for f in range(F):                                                 # static, tiny F
        hit = cols == (idx[:, f:f + 1] + f * MAXN)
        onehot = hit if onehot is None else jnp.logical_or(onehot, hit)
    onehot = onehot.astype(jnp.bfloat16)                               # MXU input only

    # Fused embedding-gather + concat + Linear1, then ReLU (f32 accumulate/elementwise).
    h = jnp.dot(onehot, t_ref[...], preferred_element_type=jnp.float32) + b1_ref[...]
    h = jnp.maximum(h, 0.0)

    # Linear2 into the lane-dense padded output tile.
    out_ref[...] = (jnp.dot(h.astype(jnp.bfloat16), w2_ref[...],
                            preferred_element_type=jnp.float32) + b2_ref[...])


def deepnet_forward(idx, emb_tables, w1, b1, w2, b2, *, tile_b=TILE_B):
    """idx: (B, F) int32 -> (B, OUT_DIM) float32"""
    B = idx.shape[0]
    assert B % tile_b == 0, "batch must be a multiple of the batch tile"

    # Fold embedding + concat + Linear1 into one stacked table:
    #   T[f*MAXN + n, :] = emb_tables[f, n, :] @ W1[f*E:(f+1)*E, :]
    w1_blocks = w1.reshape(F, EMBEDDING_DIM, HIDDEN_DIM)
    t_fused = jnp.einsum("fne,feh->fnh", emb_tables, w1_blocks)        # (F, MAXN, H)
    t_fused = t_fused.reshape(FUSED_ROWS, HIDDEN_DIM).astype(jnp.bfloat16)

    # Pad Linear2 to 128 output lanes so the final store is lane-dense.
    w2_pad = jnp.zeros((HIDDEN_DIM, OUT_PAD), jnp.float32).at[:, :OUT_DIM].set(w2)
    w2_pad = w2_pad.astype(jnp.bfloat16)
    b2_pad = jnp.zeros((1, OUT_PAD), jnp.float32).at[:, :OUT_DIM].set(b2)

    out_pad = pl.pallas_call(
        deepnet_kernel,
        out_shape=jax.ShapeDtypeStruct((B, OUT_PAD), jnp.float32),
        grid=(B // tile_b,),
        in_specs=[
            pl.BlockSpec((tile_b, F), lambda i: (i, 0)),               # idx tile
            pl.BlockSpec((FUSED_ROWS, HIDDEN_DIM), lambda i: (0, 0)),  # fused table
            pl.BlockSpec((1, HIDDEN_DIM), lambda i: (0, 0)),           # b1
            pl.BlockSpec((HIDDEN_DIM, OUT_PAD), lambda i: (0, 0)),     # W2 (padded)
            pl.BlockSpec((1, OUT_PAD), lambda i: (0, 0)),              # b2 (padded)
        ],
        out_specs=pl.BlockSpec((tile_b, OUT_PAD), lambda i: (i, 0)),
        compiler_params=pltpu.CompilerParams(dimension_semantics=("parallel",)),
    )(idx, t_fused, b1, w2_pad, b2_pad)

    return out_pad[:, :OUT_DIM]


# --------------------------- parameter initialization ------------------------
def init_params(key):
    keys = jax.random.split(key, F + 4)
    tables = []
    for f, n_cat in enumerate(CATEGORICAL_FEATURES):
        t = jax.random.normal(keys[f], (n_cat, EMBEDDING_DIM), jnp.float32) * 0.1
        t = jnp.pad(t, ((0, MAXN - n_cat), (0, 0)))        # zero-pad, never indexed
        tables.append(t)
    emb_tables = jnp.stack(tables, axis=0)                 # (F, MAXN, E)

    w1 = jax.random.normal(keys[F + 0], (CONCAT_DIM, HIDDEN_DIM), jnp.float32) * 0.1
    b1 = jax.random.normal(keys[F + 1], (1, HIDDEN_DIM), jnp.float32) * 0.1
    w2 = jax.random.normal(keys[F + 2], (HIDDEN_DIM, OUT_DIM), jnp.float32) * 0.1
    b2 = jax.random.normal(keys[F + 3], (1, OUT_DIM), jnp.float32) * 0.1
    return emb_tables, w1, b1, w2, b2


# ------------------------------ pure-JAX reference ---------------------------
def reference_forward(idx, emb_tables, w1, b1, w2, b2):
    feats = [emb_tables[f][idx[:, f]] for f in range(F)]
    x = jnp.concatenate(feats, axis=1)
    h = jnp.maximum(x @ w1 + b1, 0.0)
    return h @ w2 + b2


# ------------------------------------ main -----------------------------------
if __name__ == "__main__":
    key = jax.random.PRNGKey(0)
    pkey, ikey = jax.random.split(key)
    emb_tables, w1, b1, w2, b2 = init_params(pkey)

    # Deterministic categorical inputs: per-feature indices in [0, n_categories).
    ikeys = jax.random.split(ikey, F)
    idx_cols = [jax.random.randint(ikeys[f], (BATCH, 1), 0, n_cat, jnp.int32)
                for f, n_cat in enumerate(CATEGORICAL_FEATURES)]
    idx = jnp.concatenate(idx_cols, axis=1)                # (B, F) int32

    out = deepnet_forward(idx, emb_tables, w1, b1, w2, b2)
    out = jax.block_until_ready(out)

    ref = reference_forward(idx, emb_tables, w1, b1, w2, b2)
    assert out.shape == (BATCH, OUT_DIM)
    # bf16 MXU inputs -> loosened tolerance vs f32 reference
    assert jnp.allclose(out, ref, atol=2e-2, rtol=2e-2), "mismatch vs JAX reference"

    print("KERNEL_OK")
</pallas_src>

<mosaic_0001>
module attributes {stable_mosaic.version = 11 : i64} {
  func.func @deepnet_kernel(%arg0: i32, %arg1: memref<128x4xi32, #tpu.memory_space<vmem>>, %arg2: memref<48x32xbf16, #tpu.memory_space<vmem>>, %arg3: memref<1x32xf32, #tpu.memory_space<vmem>>, %arg4: memref<32x128xbf16, #tpu.memory_space<vmem>>, %arg5: memref<1x128xf32, #tpu.memory_space<vmem>>, %arg6: memref<128x128xf32, #tpu.memory_space<vmem>>) attributes {dimension_semantics = [#tpu.dimension_semantics<parallel>], iteration_bounds = array<i64: 2>, scalar_prefetch = 0 : i64, scratch_operands = 0 : i64, tpu.core_type = #tpu.core_type<tc>, window_params = [{transform_indices = @transform_0, window_bounds = array<i64: 128, 4>}, {pipeline_mode = #tpu.pipeline_mode<synchronous>, transform_indices = @transform_1, window_bounds = array<i64: 48, 32>}, {pipeline_mode = #tpu.pipeline_mode<synchronous>, transform_indices = @transform_2, window_bounds = array<i64: 1, 32>}, {pipeline_mode = #tpu.pipeline_mode<synchronous>, transform_indices = @transform_3, window_bounds = array<i64: 32, 128>}, {pipeline_mode = #tpu.pipeline_mode<synchronous>, transform_indices = @transform_4, window_bounds = array<i64: 1, 128>}, {transform_indices = @transform_5, window_bounds = array<i64: 128, 128>}]} {
    %c0 = arith.constant 0 : index
    %c0_0 = arith.constant 0 : index
    %0 = vector.load %arg1[%c0, %c0_0] : memref<128x4xi32, #tpu.memory_space<vmem>>, vector<128x4xi32>
    %1 = tpu.iota {dimensions = array<i32: 1>} : vector<128x48xi32>
    %2 = vector.extract_strided_slice %0 {offsets = [0, 0], sizes = [128, 1], strides = [1, 1]} : vector<128x4xi32> to vector<128x1xi32>
    %c0_i32 = arith.constant 0 : i32
    %3 = vector.broadcast %c0_i32 : i32 to vector<128x1xi32>
    %4 = arith.addi %2, %3 : vector<128x1xi32>
    %5 = vector.broadcast %4 : vector<128x1xi32> to vector<128x48xi32>
    %6 = arith.cmpi eq, %1, %5 : vector<128x48xi32>
    %7 = vector.extract_strided_slice %0 {offsets = [0, 1], sizes = [128, 1], strides = [1, 1]} : vector<128x4xi32> to vector<128x1xi32>
    %c12_i32 = arith.constant 12 : i32
    %8 = vector.broadcast %c12_i32 : i32 to vector<128x1xi32>
    %9 = arith.addi %7, %8 : vector<128x1xi32>
    %10 = vector.broadcast %9 : vector<128x1xi32> to vector<128x48xi32>
    %11 = arith.cmpi eq, %1, %10 : vector<128x48xi32>
    %12 = arith.ori %6, %11 : vector<128x48xi1>
    %13 = vector.extract_strided_slice %0 {offsets = [0, 2], sizes = [128, 1], strides = [1, 1]} : vector<128x4xi32> to vector<128x1xi32>
    %c24_i32 = arith.constant 24 : i32
    %14 = vector.broadcast %c24_i32 : i32 to vector<128x1xi32>
    %15 = arith.addi %13, %14 : vector<128x1xi32>
    %16 = vector.broadcast %15 : vector<128x1xi32> to vector<128x48xi32>
    %17 = arith.cmpi eq, %1, %16 : vector<128x48xi32>
    %18 = arith.ori %12, %17 : vector<128x48xi1>
    %19 = vector.extract_strided_slice %0 {offsets = [0, 3], sizes = [128, 1], strides = [1, 1]} : vector<128x4xi32> to vector<128x1xi32>
    %c36_i32 = arith.constant 36 : i32
    %20 = vector.broadcast %c36_i32 : i32 to vector<128x1xi32>
    %21 = arith.addi %19, %20 : vector<128x1xi32>
    %22 = vector.broadcast %21 : vector<128x1xi32> to vector<128x48xi32>
    %23 = arith.cmpi eq, %1, %22 : vector<128x48xi32>
    %24 = arith.ori %18, %23 : vector<128x48xi1>
    %25 = arith.extui %24 : vector<128x48xi1> to vector<128x48xi32>
    %26 = arith.sitofp %25 : vector<128x48xi32> to vector<128x48xf32>
    %27 = arith.truncf %26 : vector<128x48xf32> to vector<128x48xbf16>
    %c0_1 = arith.constant 0 : index
    %c0_2 = arith.constant 0 : index
    %28 = vector.load %arg2[%c0_1, %c0_2] : memref<48x32xbf16, #tpu.memory_space<vmem>>, vector<48x32xbf16>
    %cst = arith.constant dense<0.000000e+00> : vector<128x32xf32>
    %29 = tpu.matmul %27, %28, %cst {dimension_numbers = #tpu.dot_dimension_numbers<[1], [0], [0], [1], [0, 0, 1, 1], [], []>} : vector<128x48xbf16>, vector<48x32xbf16>, vector<128x32xf32> -> vector<128x32xf32>
    %c0_3 = arith.constant 0 : index
    %c0_4 = arith.constant 0 : index
    %30 = vector.load %arg3[%c0_3, %c0_4] : memref<1x32xf32, #tpu.memory_space<vmem>>, vector<1x32xf32>
    %31 = vector.broadcast %30 : vector<1x32xf32> to vector<128x32xf32>
    %32 = arith.addf %29, %31 : vector<128x32xf32>
    %cst_5 = arith.constant 0.000000e+00 : f32
    %33 = vector.broadcast %cst_5 : f32 to vector<128x32xf32>
    %34 = arith.maximumf %32, %33 : vector<128x32xf32>
    %35 = arith.truncf %34 : vector<128x32xf32> to vector<128x32xbf16>
    %c0_6 = arith.constant 0 : index
    %c0_7 = arith.constant 0 : index
    %36 = vector.load %arg4[%c0_6, %c0_7] : memref<32x128xbf16, #tpu.memory_space<vmem>>, vector<32x128xbf16>
    %cst_8 = arith.constant dense<0.000000e+00> : vector<128x128xf32>
    %37 = tpu.matmul %35, %36, %cst_8 {dimension_numbers = #tpu.dot_dimension_numbers<[1], [0], [0], [1], [0, 0, 1, 1], [], []>} : vector<128x32xbf16>, vector<32x128xbf16>, vector<128x128xf32> -> vector<128x128xf32>
    %c0_9 = arith.constant 0 : index
    %c0_10 = arith.constant 0 : index
    %38 = vector.load %arg5[%c0_9, %c0_10] : memref<1x128xf32, #tpu.memory_space<vmem>>, vector<1x128xf32>
    %39 = vector.broadcast %38 : vector<1x128xf32> to vector<128x128xf32>
    %40 = arith.addf %37, %39 : vector<128x128xf32>
    %c0_11 = arith.constant 0 : index
    %c0_12 = arith.constant 0 : index
    %41 = vector.load %arg6[%c0_11, %c0_12] : memref<128x128xf32, #tpu.memory_space<vmem>>, vector<128x128xf32>
    tpu.vector_store %arg6[%c0_11, %c0_12], %40 {strides = array<i32>} : memref<128x128xf32, #tpu.memory_space<vmem>>, vector<128x128xf32>,
    return
  }
  func.func @transform_0(%arg0: i32) -> (i32, i32) {
    %c0_i32 = arith.constant 0 : i32
    %c0_i32_0 = arith.constant 0 : i32
    return %arg0, %c0_i32 : i32, i32
  }
  func.func @transform_1(%arg0: i32) -> (i32, i32) {
    %c0_i32 = arith.constant 0 : i32
    %c0_i32_0 = arith.constant 0 : i32
    %c0_i32_1 = arith.constant 0 : i32
    return %c0_i32, %c0_i32_0 : i32, i32
  }
  func.func @transform_2(%arg0: i32) -> (i32, i32) {
    %c0_i32 = arith.constant 0 : i32
    %c0_i32_0 = arith.constant 0 : i32
    %c0_i32_1 = arith.constant 0 : i32
    return %c0_i32, %c0_i32_0 : i32, i32
  }
  func.func @transform_3(%arg0: i32) -> (i32, i32) {
    %c0_i32 = arith.constant 0 : i32
    %c0_i32_0 = arith.constant 0 : i32
    %c0_i32_1 = arith.constant 0 : i32
    return %c0_i32, %c0_i32_0 : i32, i32
  }
  func.func @transform_4(%arg0: i32) -> (i32, i32) {
    %c0_i32 = arith.constant 0 : i32
    %c0_i32_0 = arith.constant 0 : i32
    %c0_i32_1 = arith.constant 0 : i32
    return %c0_i32, %c0_i32_0 : i32, i32
  }
  func.func @transform_5(%arg0: i32) -> (i32, i32) {
    %c0_i32 = arith.constant 0 : i32
    %c0_i32_0 = arith.constant 0 : i32
    return %arg0, %c0_i32 : i32, i32
  }
}

</mosaic_0001>

<llo_original>
// kernel: tpu_custom_call.1
$region0: #{tpu_custom_call.1}
  #allocation0 [shape = 'u32[]', space=smem, size = 0x4, offset = 0x4, fixed_abs, tag = 'smem constant byte address 0x4 - core index']
  #allocation1 [shape = 'u32[144,128]{1,0:T(1,128)}', space=vmem, size = 0x12000, scoped, tag = 'internal scratch']
  %s0 = inlined_call_operand.vmem [shape: s32[256,4], index: 0, kind: input, shape index: {}]
  %s1 = inlined_call_operand.vmem [shape: bf16[48,32], index: 1, kind: input, shape index: {}]
  %s2 = inlined_call_operand.vmem [shape: f32[1,32], index: 2, kind: input, shape index: {}]
  %s3 = inlined_call_operand.vmem [shape: bf16[32,128], index: 3, kind: input, shape index: {}]
  %s4 = inlined_call_operand.vmem [shape: f32[1,128], index: 4, kind: input, shape index: {}]
  %s5 = inlined_call_operand.hbm [shape: f32[256,128], index: 5, kind: output, shape index: {}]
  %s6 = sld [smem:[#allocation0]]
  $region53: #{tpu_custom_call.1} parent=0
    _
  %s8 = ssub.s32 1, %s6
  %s9 = scalar_select 0, %s8, %s6
  $region1: #{tpu_custom_call.1} parent=0
    #allocation2 [shape = 'u8[131072]{0}', space=vmem, size = 0x20000, scoped, tag = 'output window, operand 0']
    #allocation3 [shape = 's32[2]{0}', space=sflag, size = 0x8, scoped, tag = 'scoped memory for tpu_custom_call.1']
    %10 = vsyncpa [#allocation3], 0
    %s11 = scalar_lea.sflag [#allocation3], 1
    %12 = vsyncpa %s11, 0
    loop: start=0, step=1, limit=4
    $region2: #{tpu_custom_call.1} parent=1 // loop_pre_header
      _
    $region3: #{tpu_custom_call.1} parent=1 // loop_header
      %s14 = sphi 0, %s18
      %p15 = scmp.ge.s32.totalorder %s14, 4
      %s24 = sphi 0, %s26
      %s27 = sphi 0, %s24
      %s28 = sphi 0, %s27
      %s44 = sphi 0, %s28
      %s48 = sphi 0, %s48
      %s50 = sphi 0, %s48
      %s51 = sphi 0, %s50
      %s65 = sphi 0, %s51
      %s69 = sphi 0, %s69
      %s71 = sphi 0, %s69
      %s72 = sphi 0, %s71
      %s86 = sphi 0, %s72
      %s90 = sphi 0, %s90
      %s92 = sphi 0, %s90
      %s93 = sphi 0, %s92
      %s107 = sphi 0, %s93
      %s111 = sphi 0, %s111
      %s113 = sphi 0, %s111
      %s114 = sphi 0, %s113
      %s128 = sphi 0, %s114
      %s134 = sphi 0, %s136
      %s137 = sphi 0, %s134
      %s138 = sphi 0, %s137
      %s154 = sphi 0, %s138
    $region4: #{tpu_custom_call.1} parent=1 // loop_header_branch
      %17 = sbr.rel (%p15) target = $region8
    $region5: #{tpu_custom_call.1} parent=1 // loop_body
      %s19 = ssub.s32 %s14, 1
      %s20 = ssub.s32 %s14, 2
      %s21 = sadd.s32 %s14, 1
      %s22 = ssub.s32 %s14, %s21
      %p23 = scmp.eq.s32.totalorder %s22, 0
      %s25 = sadd.s32 %s24, 1
      %s26 = scalar_select %p23, %s24, %s25
      %p29 = pneg %p23
      %p30 = scmp.eq.s32.totalorder %s14, 1
      %p31 = por %p29, %p30
      %p32 = scmp.ne.s32.totalorder %s24, %s27
      %p33 = scmp.eq.s32.totalorder %s14, 0
      %p34 = por %p32, %p33
      %p35 = scmp.ne.s32.totalorder %s24, %s27
      %p36 = scmp.eq.s32.totalorder %s19, 1
      %p37 = por %p35, %p36
      %p38 = scmp.ne.s32.totalorder %s27, %s28
      %p39 = scmp.eq.s32.totalorder %s19, 0
      %p40 = por %p38, %p39
      %p41 = scmp.ne.s32.totalorder %s27, %s28
      %p42 = scmp.eq.s32.totalorder %s20, 1
      %p43 = por %p41, %p42
      %p45 = scmp.ne.s32.totalorder %s28, %s44
      %p46 = scmp.eq.s32.totalorder %s20, 0
      %p47 = por %p45, %p46
      %s49 = sadd.s32 %s48, 1
      %p52 = scmp.eq.s32.totalorder %s14, 1
      %p53 = scmp.ne.s32.totalorder %s48, %s50
      %p54 = scmp.eq.s32.totalorder %s14, 0
      %p55 = por %p53, %p54
      %p56 = scmp.ne.s32.totalorder %s48, %s50
      %p57 = scmp.eq.s32.totalorder %s19, 1
      %p58 = por %p56, %p57
      %p59 = scmp.ne.s32.totalorder %s50, %s51
      %p60 = scmp.eq.s32.totalorder %s19, 0
      %p61 = por %p59, %p60
      %p62 = scmp.ne.s32.totalorder %s50, %s51
      %p63 = scmp.eq.s32.totalorder %s20, 1
      %p64 = por %p62, %p63
      %p66 = scmp.ne.s32.totalorder %s51, %s65
      %p67 = scmp.eq.s32.totalorder %s20, 0
      %p68 = por %p66, %p67
      %s70 = sadd.s32 %s69, 1
      %p73 = scmp.eq.s32.totalorder %s14, 1
      %p74 = scmp.ne.s32.totalorder %s69, %s71
      %p75 = scmp.eq.s32.totalorder %s14, 0
      %p76 = por %p74, %p75
      %p77 = scmp.ne.s32.totalorder %s69, %s71
      %p78 = scmp.eq.s32.totalorder %s19, 1
      %p79 = por %p77, %p78
      %p80 = scmp.ne.s32.totalorder %s71, %s72
      %p81 = scmp.eq.s32.totalorder %s19, 0
      %p82 = por %p80, %p81
      %p83 = scmp.ne.s32.totalorder %s71, %s72
      %p84 = scmp.eq.s32.totalorder %s20, 1
      %p85 = por %p83, %p84
      %p87 = scmp.ne.s32.totalorder %s72, %s86
      %p88 = scmp.eq.s32.totalorder %s20, 0
      %p89 = por %p87, %p88
      %s91 = sadd.s32 %s90, 1
      %p94 = scmp.eq.s32.totalorder %s14, 1
      %p95 = scmp.ne.s32.totalorder %s90, %s92
      %p96 = scmp.eq.s32.totalorder %s14, 0
      %p97 = por %p95, %p96
      %p98 = scmp.ne.s32.totalorder %s90, %s92
      %p99 = scmp.eq.s32.totalorder %s19, 1
      %p100 = por %p98, %p99
      %p101 = scmp.ne.s32.totalorder %s92, %s93
      %p102 = scmp.eq.s32.totalorder %s19, 0
      %p103 = por %p101, %p102
      %p104 = scmp.ne.s32.totalorder %s92, %s93
      %p105 = scmp.eq.s32.totalorder %s20, 1
      %p106 = por %p104, %p105
      %p108 = scmp.ne.s32.totalorder %s93, %s107
      %p109 = scmp.eq.s32.totalorder %s20, 0
      %p110 = por %p108, %p109
      %s112 = sadd.s32 %s111, 1
      %p115 = scmp.eq.s32.totalorder %s14, 1
      %p116 = scmp.ne.s32.totalorder %s111, %s113
      %p117 = scmp.eq.s32.totalorder %s14, 0
      %p118 = por %p116, %p117
      %p119 = scmp.ne.s32.totalorder %s111, %s113
      %p120 = scmp.eq.s32.totalorder %s19, 1
      %p121 = por %p119, %p120
      %p122 = scmp.ne.s32.totalorder %s113, %s114
      %p123 = scmp.eq.s32.totalorder %s19, 0
      %p124 = por %p122, %p123
      %p125 = scmp.ne.s32.totalorder %s113, %s114
      %p126 = scmp.eq.s32.totalorder %s20, 1
      %p127 = por %p125, %p126
      %p129 = scmp.ne.s32.totalorder %s114, %s128
      %p130 = scmp.eq.s32.totalorder %s20, 0
      %p131 = por %p129, %p130
      %s132 = ssub.s32 %s14, %s21
      %p133 = scmp.eq.s32.totalorder %s132, 0
      %s135 = sadd.s32 %s134, 1
      %s136 = scalar_select %p133, %s134, %s135
      %p139 = pneg %p133
      %p140 = scmp.eq.s32.totalorder %s14, 1
      %p141 = por %p139, %p140
      %p142 = scmp.ne.s32.totalorder %s134, %s137
      %p143 = scmp.eq.s32.totalorder %s14, 0
      %p144 = por %p142, %p143
      %p145 = scmp.ne.s32.totalorder %s134, %s137
      %p146 = scmp.eq.s32.totalorder %s19, 1
      %p147 = por %p145, %p146
      %p148 = scmp.ne.s32.totalorder %s137, %s138
      %p149 = scmp.eq.s32.totalorder %s19, 0
      %p150 = por %p148, %p149
      %p151 = scmp.ne.s32.totalorder %s137, %s138
      %p152 = scmp.eq.s32.totalorder %s20, 1
      %p153 = por %p151, %p152
      %p155 = scmp.ne.s32.totalorder %s138, %s154
      %p156 = scmp.eq.s32.totalorder %s20, 0
      %p157 = por %p155, %p156
      %p158 = scmp.le.s32.totalorder 1, %s14
      %p159 = scmp.lt.s32.totalorder %s14, 3
      %p160 = pnand %p158, %p159
      %p161 = pneg %p160
      // Predicated region
      $region9: #{tpu_custom_call.1} parent=5 // pred_check
        _
      $region10: #{tpu_custom_call.1} parent=5 // pred_check_branch
        %163 = sbr.rel (%p160) target = $region12
      $region11: #{tpu_custom_call.1} parent=5 // pred_region
        %s164 = ssub.s32 %s14, 1
        // Predicated region
        $region13: #{tpu_custom_call.1} parent=11 // pred_check
          %p165 = pneg %p61
        $region14: #{tpu_custom_call.1} parent=11 // pred_check_branch
          %167 = sbr.rel (%p165) target = $region16
        $region15: #{tpu_custom_call.1} parent=11 // pred_region
          _
        $region16: #{tpu_custom_call.1} parent=11 // pred_fallthru
          _
        // Predicated region
        $region17: #{tpu_custom_call.1} parent=11 // pred_check
          %p168 = pneg %p82
        $region18: #{tpu_custom_call.1} parent=11 // pred_check_branch
          %170 = sbr.rel (%p168) target = $region20
        $region19: #{tpu_custom_call.1} parent=11 // pred_region
          _
        $region20: #{tpu_custom_call.1} parent=11 // pred_fallthru
          _
        // Predicated region
        $region21: #{tpu_custom_call.1} parent=11 // pred_check
          %p171 = pneg %p103
        $region22: #{tpu_custom_call.1} parent=11 // pred_check_branch
          %173 = sbr.rel (%p171) target = $region24
        $region23: #{tpu_custom_call.1} parent=11 // pred_region
          _
        $region24: #{tpu_custom_call.1} parent=11 // pred_fallthru
          _
        // Predicated region
        $region25: #{tpu_custom_call.1} parent=11 // pred_check
          %p174 = pneg %p124
        $region26: #{tpu_custom_call.1} parent=11 // pred_check_branch
          %176 = sbr.rel (%p174) target = $region28
        $region27: #{tpu_custom_call.1} parent=11 // pred_region
          _
        $region28: #{tpu_custom_call.1} parent=11 // pred_fallthru
          _
      $region12: #{tpu_custom_call.1} parent=5 // pred_fallthru
        _
      %p177 = scmp.lt.s32.totalorder %s14, 2
      // Predicated region
      $region29: #{tpu_custom_call.1} parent=5 // pred_check
        %p178 = pneg %p177
      $region30: #{tpu_custom_call.1} parent=5 // pred_check_branch
        %180 = sbr.rel (%p178) target = $region32
      $region31: #{tpu_custom_call.1} parent=5 // pred_region
        // Predicated region
        $region33: #{tpu_custom_call.1} parent=31 // pred_check
          %p181 = pneg %p34
        $region34: #{tpu_custom_call.1} parent=31 // pred_check_branch
          %183 = sbr.rel (%p181) target = $region36
        $region35: #{tpu_custom_call.1} parent=31 // pred_region
          %s184 = smul.u32 16, %s14
          %p185 = scmp.lt.s32.totalorder %s184, 31
          %s186 = scalar_select %p185, %s184, 31
          %s187 = smul.addr %s186, 8
          %s188 = scalar_lea.vmem %s0, %s187
          %s189 = smul.u32 16, %s14
        $region36: #{tpu_custom_call.1} parent=31 // pred_fallthru
          _
      $region32: #{tpu_custom_call.1} parent=5 // pred_fallthru
        _
      %p190 = scmp.le.s32.totalorder 1, %s14
      %p191 = scmp.lt.s32.totalorder %s14, 3
      %p192 = pnand %p190, %p191
      %p193 = pneg %p192
      // Predicated region
      $region37: #{tpu_custom_call.1} parent=5 // pred_check
        _
      $region38: #{tpu_custom_call.1} parent=5 // pred_check_branch
        %195 = sbr.rel (%p192) target = $region40
      $region39: #{tpu_custom_call.1} parent=5 // pred_region
        %s196 = ssub.s32 %s14, 1
        %s197 = smul.u32 16, %s19
        %p198 = scmp.lt.s32.totalorder %s197, 31
        %s199 = scalar_select %p198, %s197, 31
        %s200 = smul.addr %s199, 8
        %s201 = scalar_lea.vmem %s0, %s200
        %p202 = pneg %p40
        %p203 = pneg %p37
        %p204 = pneg %p61
        %p205 = pneg %p58
        %p206 = pneg %p82
        %p207 = pneg %p79
        %p208 = pneg %p103
        %p209 = pneg %p100
        %p210 = pneg %p124
        %p211 = pneg %p121
        %p212 = pneg %p150
        %p213 = pneg %p147
        %s214 = sand.u32 %s137, 1
        %s215 = scalar_lea.sflag [#allocation3], %s214
        %s216 = sand.u32 %s137, 1
        %s217 = smul.addr %s216, 128
        %s218 = scalar_lea.vmem [#allocation2], %s217
        %s219 = smul.u32 16, %s19
        %p220 = scmp.lt.s32.totalorder %s219, 31
        %s221 = scalar_select %p220, %s219, 31
        %s222 = smul.addr %s221, 8
        %s223 = scalar_lea.vmem %s0, %s222
        %s224 = smul.u32 16, %s19
        %s225 = smul.u32 16, %s19
        %v227 = vld [vmem:[%s223] sm:$0xff]
        %v228 = vld [vmem:[%s223 + $0x8] sm:$0xff]
        %v229 = vld [vmem:[%s223 + $0x10] sm:$0xff]
        %v230 = vld [vmem:[%s223 + $0x18] sm:$0xff]
        %v231 = vld [vmem:[%s223 + $0x20] sm:$0xff]
        %v232 = vld [vmem:[%s223 + $0x28] sm:$0xff]
        %v233 = vld [vmem:[%s223 + $0x30] sm:$0xff]
        %v234 = vld [vmem:[%s223 + $0x38] sm:$0xff]
        %v235 = vld [vmem:[%s223 + $0x40] sm:$0xff]
        %v236 = vld [vmem:[%s223 + $0x48] sm:$0xff]
        %v237 = vld [vmem:[%s223 + $0x50] sm:$0xff]
        %v238 = vld [vmem:[%s223 + $0x58] sm:$0xff]
        %v239 = vld [vmem:[%s223 + $0x60] sm:$0xff]
        %v240 = vld [vmem:[%s223 + $0x68] sm:$0xff]
        %v241 = vld [vmem:[%s223 + $0x70] sm:$0xff]
        %v242 = vld [vmem:[%s223 + $0x78] sm:$0xff]
        %v243 = vlaneseq
        %v244 = vand.u32 %v243, 127
        %245 = vset.pattern.permute.xlu0 0
        %246 = vperm.xlu0 %245, %v227
        %v247 = vpop.permute.xlu0 %246
        %248 = vset.pattern.permute.xlu0 0
        %249 = vperm.xlu0 %248, %v228
        %v250 = vpop.permute.xlu0 %249
        %251 = vset.pattern.permute.xlu0 0
        %252 = vperm.xlu0 %251, %v229
        %v253 = vpop.permute.xlu0 %252
        %254 = vset.pattern.permute.xlu0 0
        %255 = vperm.xlu0 %254, %v230
        %v256 = vpop.permute.xlu0 %255
        %257 = vset.pattern.permute.xlu0 0
        %258 = vperm.xlu0 %257, %v231
        %v259 = vpop.permute.xlu0 %258
        %260 = vset.pattern.permute.xlu0 0
        %261 = vperm.xlu0 %260, %v232
        %v262 = vpop.permute.xlu0 %261
        %263 = vset.pattern.permute.xlu0 0
        %264 = vperm.xlu0 %263, %v233
        %v265 = vpop.permute.xlu0 %264
        %266 = vset.pattern.permute.xlu0 0
        %267 = vperm.xlu0 %266, %v234
        %v268 = vpop.permute.xlu0 %267
        %269 = vset.pattern.permute.xlu0 0
        %270 = vperm.xlu0 %269, %v235
        %v271 = vpop.permute.xlu0 %270
        %272 = vset.pattern.permute.xlu0 0
        %273 = vperm.xlu0 %272, %v236
        %v274 = vpop.permute.xlu0 %273
        %275 = vset.pattern.permute.xlu0 0
        %276 = vperm.xlu0 %275, %v237
        %v277 = vpop.permute.xlu0 %276
        %278 = vset.pattern.permute.xlu0 0
        %279 = vperm.xlu0 %278, %v238
        %v280 = vpop.permute.xlu0 %279
        %281 = vset.pattern.permute.xlu0 0
        %282 = vperm.xlu0 %281, %v239
        %v283 = vpop.permute.xlu0 %282
        %284 = vset.pattern.permute.xlu0 0
        %285 = vperm.xlu0 %284, %v240
        %v286 = vpop.permute.xlu0 %285
        %287 = vset.pattern.permute.xlu0 0
        %288 = vperm.xlu0 %287, %v241
        %v289 = vpop.permute.xlu0 %288
        %290 = vset.pattern.permute.xlu0 0
        %291 = vperm.xlu0 %290, %v242
        %v292 = vpop.permute.xlu0 %291
        %vm293 = vcmp.eq.s32.totalorder %v244, %v247
        %vm294 = vcmp.eq.s32.totalorder %v244, %v250
        %vm295 = vcmp.eq.s32.totalorder %v244, %v253
        %vm296 = vcmp.eq.s32.totalorder %v244, %v256
        %vm297 = vcmp.eq.s32.totalorder %v244, %v259
        %vm298 = vcmp.eq.s32.totalorder %v244, %v262
        %vm299 = vcmp.eq.s32.totalorder %v244, %v265
        %vm300 = vcmp.eq.s32.totalorder %v244, %v268
        %vm301 = vcmp.eq.s32.totalorder %v244, %v271
        %vm302 = vcmp.eq.s32.totalorder %v244, %v274
        %vm303 = vcmp.eq.s32.totalorder %v244, %v277
        %vm304 = vcmp.eq.s32.totalorder %v244, %v280
        %vm305 = vcmp.eq.s32.totalorder %v244, %v283
        %vm306 = vcmp.eq.s32.totalorder %v244, %v286
        %vm307 = vcmp.eq.s32.totalorder %v244, %v289
        %vm308 = vcmp.eq.s32.totalorder %v244, %v292
        %v309 = vadd.s32 %v227, 12
        %v310 = vadd.s32 %v228, 12
        %v311 = vadd.s32 %v229, 12
        %v312 = vadd.s32 %v230, 12
        %v313 = vadd.s32 %v231, 12
        %v314 = vadd.s32 %v232, 12
        %v315 = vadd.s32 %v233, 12
        %v316 = vadd.s32 %v234, 12
        %v317 = vadd.s32 %v235, 12
        %v318 = vadd.s32 %v236, 12
        %v319 = vadd.s32 %v237, 12
        %v320 = vadd.s32 %v238, 12
        %v321 = vadd.s32 %v239, 12
        %v322 = vadd.s32 %v240, 12
        %v323 = vadd.s32 %v241, 12
        %v324 = vadd.s32 %v242, 12
        %325 = vset.pattern.permute.xlu0 1
        %326 = vperm.xlu0 %325, %v309
        %v327 = vpop.permute.xlu0 %326
        %328 = vset.pattern.permute.xlu0 1
        %329 = vperm.xlu0 %328, %v310
        %v330 = vpop.permute.xlu0 %329
        %331 = vset.pattern.permute.xlu0 1
        %332 = vperm.xlu0 %331, %v311
        %v333 = vpop.permute.xlu0 %332
        %334 = vset.pattern.permute.xlu0 1
        %335 = vperm.xlu0 %334, %v312
        %v336 = vpop.permute.xlu0 %335
        %337 = vset.pattern.permute.xlu0 1
        %338 = vperm.xlu0 %337, %v313
        %v339 = vpop.permute.xlu0 %338
        %340 = vset.pattern.permute.xlu0 1
        %341 = vperm.xlu0 %340, %v314
        %v342 = vpop.permute.xlu0 %341
        %343 = vset.pattern.permute.xlu0 1
        %344 = vperm.xlu0 %343, %v315
        %v345 = vpop.permute.xlu0 %344
        %346 = vset.pattern.permute.xlu0 1
        %347 = vperm.xlu0 %346, %v316
        %v348 = vpop.permute.xlu0 %347
        %349 = vset.pattern.permute.xlu0 1
        %350 = vperm.xlu0 %349, %v317
        %v351 = vpop.permute.xlu0 %350
        %352 = vset.pattern.permute.xlu0 1
        %353 = vperm.xlu0 %352, %v318
        %v354 = vpop.permute.xlu0 %353
        %355 = vset.pattern.permute.xlu0 1
        %356 = vperm.xlu0 %355, %v319
        %v357 = vpop.permute.xlu0 %356
        %358 = vset.pattern.permute.xlu0 1
        %359 = vperm.xlu0 %358, %v320
        %v360 = vpop.permute.xlu0 %359
        %361 = vset.pattern.permute.xlu0 1
        %362 = vperm.xlu0 %361, %v321
        %v363 = vpop.permute.xlu0 %362
        %364 = vset.pattern.permute.xlu0 1
        %365 = vperm.xlu0 %364, %v322
        %v366 = vpop.permute.xlu0 %365
        %367 = vset.pattern.permute.xlu0 1
        %368 = vperm.xlu0 %367, %v323
        %v369 = vpop.permute.xlu0 %368
        %370 = vset.pattern.permute.xlu0 1
        %371 = vperm.xlu0 %370, %v324
        %v372 = vpop.permute.xlu0 %371
        %vm373 = vcmp.eq.s32.totalorder %v244, %v327
        %vm374 = vcmp.eq.s32.totalorder %v244, %v330
        %vm375 = vcmp.eq.s32.totalorder %v244, %v333
        %vm376 = vcmp.eq.s32.totalorder %v244, %v336
        %vm377 = vcmp.eq.s32.totalorder %v244, %v339
        %vm378 = vcmp.eq.s32.totalorder %v244, %v342
        %vm379 = vcmp.eq.s32.totalorder %v244, %v345
        %vm380 = vcmp.eq.s32.totalorder %v244, %v348
        %vm381 = vcmp.eq.s32.totalorder %v244, %v351
        %vm382 = vcmp.eq.s32.totalorder %v244, %v354
        %vm383 = vcmp.eq.s32.totalorder %v244, %v357
        %vm384 = vcmp.eq.s32.totalorder %v244, %v360
        %vm385 = vcmp.eq.s32.totalorder %v244, %v363
        %vm386 = vcmp.eq.s32.totalorder %v244, %v366
        %vm387 = vcmp.eq.s32.totalorder %v244, %v369
        %vm388 = vcmp.eq.s32.totalorder %v244, %v372
        %vm389 = vmor %vm293, %vm373
        %vm390 = vmor %vm294, %vm374
        %vm391 = vmor %vm295, %vm375
        %vm392 = vmor %vm296, %vm376
        %vm393 = vmor %vm297, %vm377
        %vm394 = vmor %vm298, %vm378
        %vm395 = vmor %vm299, %vm379
        %vm396 = vmor %vm300, %vm380
        %vm397 = vmor %vm301, %vm381
        %vm398 = vmor %vm302, %vm382
        %vm399 = vmor %vm303, %vm383
        %vm400 = vmor %vm304, %vm384
        %vm401 = vmor %vm305, %vm385
        %vm402 = vmor %vm306, %vm386
        %vm403 = vmor %vm307, %vm387
        %vm404 = vmor %vm308, %vm388
        %v405 = vadd.s32 %v227, 24
        %v406 = vadd.s32 %v228, 24
        %v407 = vadd.s32 %v229, 24
        %v408 = vadd.s32 %v230, 24
        %v409 = vadd.s32 %v231, 24
        %v410 = vadd.s32 %v232, 24
        %v411 = vadd.s32 %v233, 24
        %v412 = vadd.s32 %v234, 24
        %v413 = vadd.s32 %v235, 24
        %v414 = vadd.s32 %v236, 24
        %v415 = vadd.s32 %v237, 24
        %v416 = vadd.s32 %v238, 24
        %v417 = vadd.s32 %v239, 24
        %v418 = vadd.s32 %v240, 24
        %v419 = vadd.s32 %v241, 24
        %v420 = vadd.s32 %v242, 24
        %421 = vset.pattern.permute.xlu0 2
        %422 = vperm.xlu0 %421, %v405
        %v423 = vpop.permute.xlu0 %422
        %424 = vset.pattern.permute.xlu0 2
        %425 = vperm.xlu0 %424, %v406
        %v426 = vpop.permute.xlu0 %425
        %427 = vset.pattern.permute.xlu0 2
        %428 = vperm.xlu0 %427, %v407
        %v429 = vpop.permute.xlu0 %428
        %430 = vset.pattern.permute.xlu0 2
        %431 = vperm.xlu0 %430, %v408
        %v432 = vpop.permute.xlu0 %431
        %433 = vset.pattern.permute.xlu0 2
        %434 = vperm.xlu0 %433, %v409
        %v435 = vpop.permute.xlu0 %434
        %436 = vset.pattern.permute.xlu0 2
        %437 = vperm.xlu0 %436, %v410
        %v438 = vpop.permute.xlu0 %437
        %439 = vset.pattern.permute.xlu0 2
        %440 = vperm.xlu0 %439, %v411
        %v441 = vpop.permute.xlu0 %440
        %442 = vset.pattern.permute.xlu0 2
        %443 = vperm.xlu0 %442, %v412
        %v444 = vpop.permute.xlu0 %443
        %445 = vset.pattern.permute.xlu0 2
        %446 = vperm.xlu0 %445, %v413
        %v447 = vpop.permute.xlu0 %446
        %448 = vset.pattern.permute.xlu0 2
        %449 = vperm.xlu0 %448, %v414
        %v450 = vpop.permute.xlu0 %449
        %451 = vset.pattern.permute.xlu0 2
        %452 = vperm.xlu0 %451, %v415
        %v453 = vpop.permute.xlu0 %452
        %454 = vset.pattern.permute.xlu0 2
        %455 = vperm.xlu0 %454, %v416
        %v456 = vpop.permute.xlu0 %455
        %457 = vset.pattern.permute.xlu0 2
        %458 = vperm.xlu0 %457, %v417
        %v459 = vpop.permute.xlu0 %458
        %460 = vset.pattern.permute.xlu0 2
        %461 = vperm.xlu0 %460, %v418
        %v462 = vpop.permute.xlu0 %461
        %463 = vset.pattern.permute.xlu0 2
        %464 = vperm.xlu0 %463, %v419
        %v465 = vpop.permute.xlu0 %464
        %466 = vset.pattern.permute.xlu0 2
        %467 = vperm.xlu0 %466, %v420
        %v468 = vpop.permute.xlu0 %467
        %vm469 = vcmp.eq.s32.totalorder %v244, %v423
        %vm470 = vcmp.eq.s32.totalorder %v244, %v426
        %vm471 = vcmp.eq.s32.totalorder %v244, %v429
        %vm472 = vcmp.eq.s32.totalorder %v244, %v432
        %vm473 = vcmp.eq.s32.totalorder %v244, %v435
        %vm474 = vcmp.eq.s32.totalorder %v244, %v438
        %vm475 = vcmp.eq.s32.totalorder %v244, %v441
        %vm476 = vcmp.eq.s32.totalorder %v244, %v444
        %vm477 = vcmp.eq.s32.totalorder %v244, %v447
        %vm478 = vcmp.eq.s32.totalorder %v244, %v450
        %vm479 = vcmp.eq.s32.totalorder %v244, %v453
        %vm480 = vcmp.eq.s32.totalorder %v244, %v456
        %vm481 = vcmp.eq.s32.totalorder %v244, %v459
        %vm482 = vcmp.eq.s32.totalorder %v244, %v462
        %vm483 = vcmp.eq.s32.totalorder %v244, %v465
        %vm484 = vcmp.eq.s32.totalorder %v244, %v468
        %vm485 = vmor %vm389, %vm469
        %vm486 = vmor %vm390, %vm470
        %vm487 = vmor %vm391, %vm471
        %vm488 = vmor %vm392, %vm472
        %vm489 = vmor %vm393, %vm473
        %vm490 = vmor %vm394, %vm474
        %vm491 = vmor %vm395, %vm475
        %vm492 = vmor %vm396, %vm476
        %vm493 = vmor %vm397, %vm477
        %vm494 = vmor %vm398, %vm478
        %vm495 = vmor %vm399, %vm479
        %vm496 = vmor %vm400, %vm480
        %vm497 = vmor %vm401, %vm481
        %vm498 = vmor %vm402, %vm482
        %vm499 = vmor %vm403, %vm483
        %vm500 = vmor %vm404, %vm484
        %v501 = vadd.s32 %v227, 36
        %v502 = vadd.s32 %v228, 36
        %v503 = vadd.s32 %v229, 36
        %v504 = vadd.s32 %v230, 36
        %v505 = vadd.s32 %v231, 36
        %v506 = vadd.s32 %v232, 36
        %v507 = vadd.s32 %v233, 36
        %v508 = vadd.s32 %v234, 36
        %v509 = vadd.s32 %v235, 36
        %v510 = vadd.s32 %v236, 36
        %v511 = vadd.s32 %v237, 36
        %v512 = vadd.s32 %v238, 36
        %v513 = vadd.s32 %v239, 36
        %v514 = vadd.s32 %v240, 36
        %v515 = vadd.s32 %v241, 36
        %v516 = vadd.s32 %v242, 36
        %517 = vset.pattern.permute.xlu0 3
        %518 = vperm.xlu0 %517, %v501
        %v519 = vpop.permute.xlu0 %518
        %520 = vset.pattern.permute.xlu0 3
        %521 = vperm.xlu0 %520, %v502
        %v522 = vpop.permute.xlu0 %521
        %523 = vset.pattern.permute.xlu0 3
        %524 = vperm.xlu0 %523, %v503
        %v525 = vpop.permute.xlu0 %524
        %526 = vset.pattern.permute.xlu0 3
        %527 = vperm.xlu0 %526, %v504
        %v528 = vpop.permute.xlu0 %527
        %529 = vset.pattern.permute.xlu0 3
        %530 = vperm.xlu0 %529, %v505
        %v531 = vpop.permute.xlu0 %530
        %532 = vset.pattern.permute.xlu0 3
        %533 = vperm.xlu0 %532, %v506
        %v534 = vpop.permute.xlu0 %533
        %535 = vset.pattern.permute.xlu0 3
        %536 = vperm.xlu0 %535, %v507
        %v537 = vpop.permute.xlu0 %536
        %538 = vset.pattern.permute.xlu0 3
        %539 = vperm.xlu0 %538, %v508
        %v540 = vpop.permute.xlu0 %539
        %541 = vset.pattern.permute.xlu0 3
        %542 = vperm.xlu0 %541, %v509
        %v543 = vpop.permute.xlu0 %542
        %544 = vset.pattern.permute.xlu0 3
        %545 = vperm.xlu0 %544, %v510
        %v546 = vpop.permute.xlu0 %545
        %547 = vset.pattern.permute.xlu0 3
        %548 = vperm.xlu0 %547, %v511
        %v549 = vpop.permute.xlu0 %548
        %550 = vset.pattern.permute.xlu0 3
        %551 = vperm.xlu0 %550, %v512
        %v552 = vpop.permute.xlu0 %551
        %553 = vset.pattern.permute.xlu0 3
        %554 = vperm.xlu0 %553, %v513
        %v555 = vpop.permute.xlu0 %554
        %556 = vset.pattern.permute.xlu0 3
        %557 = vperm.xlu0 %556, %v514
        %v558 = vpop.permute.xlu0 %557
        %559 = vset.pattern.permute.xlu0 3
        %560 = vperm.xlu0 %559, %v515
        %v561 = vpop.permute.xlu0 %560
        %562 = vset.pattern.permute.xlu0 3
        %563 = vperm.xlu0 %562, %v516
        %v564 = vpop.permute.xlu0 %563
        %vm565 = vcmp.eq.s32.totalorder %v244, %v519
        %vm566 = vcmp.eq.s32.totalorder %v244, %v522
        %vm567 = vcmp.eq.s32.totalorder %v244, %v525
        %vm568 = vcmp.eq.s32.totalorder %v244, %v528
        %vm569 = vcmp.eq.s32.totalorder %v244, %v531
        %vm570 = vcmp.eq.s32.totalorder %v244, %v534
        %vm571 = vcmp.eq.s32.totalorder %v244, %v537
        %vm572 = vcmp.eq.s32.totalorder %v244, %v540
        %vm573 = vcmp.eq.s32.totalorder %v244, %v543
        %vm574 = vcmp.eq.s32.totalorder %v244, %v546
        %vm575 = vcmp.eq.s32.totalorder %v244, %v549
        %vm576 = vcmp.eq.s32.totalorder %v244, %v552
        %vm577 = vcmp.eq.s32.totalorder %v244, %v555
        %vm578 = vcmp.eq.s32.totalorder %v244, %v558
        %vm579 = vcmp.eq.s32.totalorder %v244, %v561
        %vm580 = vcmp.eq.s32.totalorder %v244, %v564
        %vm581 = vmor %vm485, %vm565
        %vm582 = vmor %vm486, %vm566
        %vm583 = vmor %vm487, %vm567
        %vm584 = vmor %vm488, %vm568
        %vm585 = vmor %vm489, %vm569
        %vm586 = vmor %vm490, %vm570
        %vm587 = vmor %vm491, %vm571
        %vm588 = vmor %vm492, %vm572
        %vm589 = vmor %vm493, %vm573
        %vm590 = vmor %vm494, %vm574
        %vm591 = vmor %vm495, %vm575
        %vm592 = vmor %vm496, %vm576
        %vm593 = vmor %vm497, %vm577
        %vm594 = vmor %vm498, %vm578
        %vm595 = vmor %vm499, %vm579
        %vm596 = vmor %vm500, %vm580
        %v597 = vsel %vm581, 1, 0
        %v598 = vsel %vm582, 1, 0
        %v599 = vsel %vm583, 1, 0
        %v600 = vsel %vm584, 1, 0
        %v601 = vsel %vm585, 1, 0
        %v602 = vsel %vm586, 1, 0
        %v603 = vsel %vm587, 1, 0
        %v604 = vsel %vm588, 1, 0
        %v605 = vsel %vm589, 1, 0
        %v606 = vsel %vm590, 1, 0
        %v607 = vsel %vm591, 1, 0
        %v608 = vsel %vm592, 1, 0
        %v609 = vsel %vm593, 1, 0
        %v610 = vsel %vm594, 1, 0
        %v611 = vsel %vm595, 1, 0
        %v612 = vsel %vm596, 1, 0
        %v613 = vcvt.s32.f32 %v597
        %v614 = vcvt.s32.f32 %v598
        %v615 = vcvt.s32.f32 %v599
        %v616 = vcvt.s32.f32 %v600
        %v617 = vcvt.s32.f32 %v601
        %v618 = vcvt.s32.f32 %v602
        %v619 = vcvt.s32.f32 %v603
        %v620 = vcvt.s32.f32 %v604
        %v621 = vcvt.s32.f32 %v605
        %v622 = vcvt.s32.f32 %v606
        %v623 = vcvt.s32.f32 %v607
        %v624 = vcvt.s32.f32 %v608
        %v625 = vcvt.s32.f32 %v609
        %v626 = vcvt.s32.f32 %v610
        %v627 = vcvt.s32.f32 %v611
        %v628 = vcvt.s32.f32 %v612
        %v629 = vpack.c.bf16 %v614, %v613
        %v630 = vpack.c.bf16 %v616, %v615
        %v631 = vpack.c.bf16 %v618, %v617
        %v632 = vpack.c.bf16 %v620, %v619
        %v633 = vpack.c.bf16 %v622, %v621
        %v634 = vpack.c.bf16 %v624, %v623
        %v635 = vpack.c.bf16 %v626, %v625
        %v636 = vpack.c.bf16 %v628, %v627
        %v637 = vld [vmem:[%s1] sm:$0xf]
        %v638 = vld [vmem:[%s1 + $0x4] sm:$0xf]
        %v639 = vld [vmem:[%s1 + $0x8] sm:$0xf]
        %v640 = vld [vmem:[%s1 + $0xc] sm:$0xf]
        %v641 = vld [vmem:[%s1 + $0x10] sm:$0xf]
        %v642 = vld [vmem:[%s1 + $0x14] sm:$0xf]
        %v643 = vld [vmem:[%s2] sm:$0x1]
        %v645 = vlaneseq
        %v646 = vshrl.u32 %v645, 7
        %v647 = vsub.s32 0, %v646
        %v648 = vrot.slane %v643, %v647
        %v656 = vunpack.c.l.b16 %v637
        %v657 = vunpack.c.l.b16 %v638
        %v658 = vunpack.c.l.b16 %v639
        %v659 = vunpack.c.l.b16 %v640
        %v660 = vunpack.c.l.b16 %v641
        %v661 = vunpack.c.l.b16 %v642
        %v662 = vpack.c.b16 %v657, %v656
        %v663 = vpack.c.b16 %v659, %v658
        %v664 = vpack.c.b16 %v661, %v660
        %vm668 = vcmask 392192
        %v670 = vsel %vm668, %v629, 0
        %v673 = vsel %vm668, %v630, 0
        %v676 = vsel %vm668, %v631, 0
        %v679 = vsel %vm668, %v632, 0
        %v682 = vsel %vm668, %v633, 0
        %v685 = vsel %vm668, %v634, 0
        %v688 = vsel %vm668, %v635, 0
        %v691 = vsel %vm668, %v636, 0
        %693 = vmatprep.subr.bf16.mxu0 0
        %694 = vmatpush1.bf16.msra.mxu0 0
        %695 = vmatprep.subr.bf16.mxu0 0
        %696 = vmatpush1.bf16.msra.mxu0 0
        %697 = vmatprep.subr.bf16.mxu0 0
        %698 = vmatpush1.bf16.msra.mxu0 0
        %699 = vmatprep.subr.bf16.mxu0 0
        %700 = vmatpush1.bf16.msra.mxu0 0
        %701 = vmatprep.subr.bf16.mxu0 0
        %702 = vmatpush1.bf16.msra.mxu0 0
        %703 = vmatprep.subr.bf16.mxu0 0
        %704 = vmatpush1.bf16.msra.mxu0 %v664
        %705 = vmatprep.subr.bf16.mxu0 0
        %706 = vmatpush1.bf16.msra.mxu0 %v663
        %707 = vmatprep.subr.bf16.mxu0 0
        %708 = vmatpush1.bf16.msra.mxu0 %v662
        %709 = vmatprep.subr.bf16.mxu0 0
        %710 = vmatpush2.bf16.msra.mxu0 0
        %711 = vmatprep.subr.bf16.mxu0 0
        %712 = vmatpush2.bf16.msra.mxu0 0
        %713 = vmatprep.subr.bf16.mxu0 0
        %714 = vmatpush2.bf16.msra.mxu0 0
        %715 = vmatprep.subr.bf16.mxu0 0
        %716 = vmatpush2.bf16.msra.mxu0 0
        %717 = vmatprep.subr.bf16.mxu0 0
        %718 = vmatpush2.bf16.msra.mxu0 0
        %719 = vmatprep.subr.bf16.mxu0 0
        %720 = vmatpush2.bf16.msra.mxu0 0
        %721 = vmatprep.subr.bf16.mxu0 0
        %722 = vmatpush2.bf16.msra.mxu0 0
        %723 = vmatprep.subr.bf16.mxu0 0
        %724 = vmatpush2.bf16.msra.mxu0 0
        %725 = vmatprep.mubr.bf16.mxu0 0
        %726 = vmatmul.mubr.bf16.gmra.mxu0 %v670
        %v727 = vpop.f32.mrf.mxu0
        %v728 = vadd.f32 %v648, %v727
        %v729 = vpop.f32.mrf.mxu0
        %v730 = vpop.f32.mrf.mxu0
        %v731 = vadd.f32 %v648, %v730
        %v732 = vpop.f32.mrf.mxu0
        %733 = vmatprep.mubr.bf16.mxu0 0
        %734 = vmatmul.mubr.bf16.gmra.mxu0 %v673
        %v735 = vpop.f32.mrf.mxu0
        %v736 = vadd.f32 %v648, %v735
        %v737 = vpop.f32.mrf.mxu0
        %v738 = vpop.f32.mrf.mxu0
        %v739 = vadd.f32 %v648, %v738
        %v740 = vpop.f32.mrf.mxu0
        %741 = vmatprep.mubr.bf16.mxu0 0
        %742 = vmatmul.mubr.bf16.gmra.mxu0 %v676
        %v743 = vpop.f32.mrf.mxu0
        %v744 = vadd.f32 %v648, %v743
        %v745 = vpop.f32.mrf.mxu0
        %v746 = vpop.f32.mrf.mxu0
        %v747 = vadd.f32 %v648, %v746
        %v748 = vpop.f32.mrf.mxu0
        %749 = vmatprep.mubr.bf16.mxu0 0
        %750 = vmatmul.mubr.bf16.gmra.mxu0 %v679
        %v751 = vpop.f32.mrf.mxu0
        %v752 = vadd.f32 %v648, %v751
        %v753 = vpop.f32.mrf.mxu0
        %v754 = vpop.f32.mrf.mxu0
        %v755 = vadd.f32 %v648, %v754
        %v756 = vpop.f32.mrf.mxu0
        %757 = vmatprep.mubr.bf16.mxu0 0
        %758 = vmatmul.mubr.bf16.gmra.mxu0 %v682
        %v759 = vpop.f32.mrf.mxu0
        %v760 = vadd.f32 %v648, %v759
        %v761 = vpop.f32.mrf.mxu0
        %v762 = vpop.f32.mrf.mxu0
        %v763 = vadd.f32 %v648, %v762
        %v764 = vpop.f32.mrf.mxu0
        %765 = vmatprep.mubr.bf16.mxu0 0
        %766 = vmatmul.mubr.bf16.gmra.mxu0 %v685
        %v767 = vpop.f32.mrf.mxu0
        %v768 = vadd.f32 %v648, %v767
        %v769 = vpop.f32.mrf.mxu0
        %v770 = vpop.f32.mrf.mxu0
        %v771 = vadd.f32 %v648, %v770
        %v772 = vpop.f32.mrf.mxu0
        %773 = vmatprep.mubr.bf16.mxu0 0
        %774 = vmatmul.mubr.bf16.gmra.mxu0 %v688
        %v775 = vpop.f32.mrf.mxu0
        %v776 = vadd.f32 %v648, %v775
        %v777 = vpop.f32.mrf.mxu0
        %v778 = vpop.f32.mrf.mxu0
        %v779 = vadd.f32 %v648, %v778
        %v780 = vpop.f32.mrf.mxu0
        %781 = vmatprep.mubr.bf16.mxu0 0
        %782 = vmatmul.mubr.bf16.gmra.mxu0 %v691
        %v783 = vpop.f32.mrf.mxu0
        %v784 = vadd.f32 %v648, %v783
        %v785 = vpop.f32.mrf.mxu0
        %v786 = vpop.f32.mrf.mxu0
        %v787 = vadd.f32 %v648, %v786
        %v788 = vpop.f32.mrf.mxu0
        %789 = vdwg.mxu0
        %v790 = vmax.f32 %v728, 0.0
        %v791 = vmax.f32 %v731, 0.0
        %v792 = vmax.f32 %v736, 0.0
        %v793 = vmax.f32 %v739, 0.0
        %v794 = vmax.f32 %v744, 0.0
        %v795 = vmax.f32 %v747, 0.0
        %v796 = vmax.f32 %v752, 0.0
        %v797 = vmax.f32 %v755, 0.0
        %v798 = vmax.f32 %v760, 0.0
        %v799 = vmax.f32 %v763, 0.0
        %v800 = vmax.f32 %v768, 0.0
        %v801 = vmax.f32 %v771, 0.0
        %v802 = vmax.f32 %v776, 0.0
        %v803 = vmax.f32 %v779, 0.0
        %v804 = vmax.f32 %v784, 0.0
        %v805 = vmax.f32 %v787, 0.0
        %v806 = vpack.c.bf16 %v791, %v790
        %v807 = vpack.c.bf16 %v793, %v792
        %v808 = vpack.c.bf16 %v795, %v794
        %v809 = vpack.c.bf16 %v797, %v796
        %v810 = vpack.c.bf16 %v799, %v798
        %v811 = vpack.c.bf16 %v801, %v800
        %v812 = vpack.c.bf16 %v803, %v802
        %v813 = vpack.c.bf16 %v805, %v804
        %v814 = vld [vmem:[%s3] sm:$0xf]
        %v815 = vld [vmem:[%s3 + $0x4] sm:$0xf]
        %v816 = vld [vmem:[%s3 + $0x8] sm:$0xf]
        %v817 = vld [vmem:[%s3 + $0xc] sm:$0xf]
        %v818 = vld [vmem:[%s4] sm:$0x1]
        %v820 = vlaneseq
        %v821 = vshrl.u32 %v820, 7
        %v822 = vsub.s32 0, %v821
        %v823 = vrot.slane %v818, %v822
        %v829 = vunpack.c.l.b16 %v814
        %v830 = vunpack.c.l.b16 %v815
        %v831 = vunpack.c.l.b16 %v816
        %v832 = vunpack.c.l.b16 %v817
        %v833 = vpack.c.b16 %v830, %v829
        %v834 = vpack.c.b16 %v832, %v831
        %vm837 = vcmask 261120
        %v839 = vsel %vm837, %v806, 0
        %v842 = vsel %vm837, %v807, 0
        %v845 = vsel %vm837, %v808, 0
        %v848 = vsel %vm837, %v809, 0
        %v851 = vsel %vm837, %v810, 0
        %v854 = vsel %vm837, %v811, 0
        %v857 = vsel %vm837, %v812, 0
        %v860 = vsel %vm837, %v813, 0
        %862 = vmatprep.subr.bf16.mxu0 0
        %863 = vmatpush1.bf16.msra.mxu0 0
        %864 = vmatprep.subr.bf16.mxu0 0
        %865 = vmatpush1.bf16.msra.mxu0 0
        %866 = vmatprep.subr.bf16.mxu0 0
        %867 = vmatpush1.bf16.msra.mxu0 0
        %868 = vmatprep.subr.bf16.mxu0 0
        %869 = vmatpush1.bf16.msra.mxu0 0
        %870 = vmatprep.subr.bf16.mxu0 0
        %871 = vmatpush1.bf16.msra.mxu0 0
        %872 = vmatprep.subr.bf16.mxu0 0
        %873 = vmatpush1.bf16.msra.mxu0 0
        %874 = vmatprep.subr.bf16.mxu0 0
        %875 = vmatpush1.bf16.msra.mxu0 %v834
        %876 = vmatprep.subr.bf16.mxu0 0
        %877 = vmatpush1.bf16.msra.mxu0 %v833
        %878 = vmatprep.subr.bf16.mxu0 0
        %879 = vmatpush2.bf16.msra.mxu0 0
        %880 = vmatprep.subr.bf16.mxu0 0
        %881 = vmatpush2.bf16.msra.mxu0 0
        %882 = vmatprep.subr.bf16.mxu0 0
        %883 = vmatpush2.bf16.msra.mxu0 0
        %884 = vmatprep.subr.bf16.mxu0 0
        %885 = vmatpush2.bf16.msra.mxu0 0
        %886 = vmatprep.subr.bf16.mxu0 0
        %887 = vmatpush2.bf16.msra.mxu0 0
        %888 = vmatprep.subr.bf16.mxu0 0
        %889 = vmatpush2.bf16.msra.mxu0 0
        %890 = vmatprep.subr.bf16.mxu0 0
        %891 = vmatpush2.bf16.msra.mxu0 0
        %892 = vmatprep.subr.bf16.mxu0 0
        %893 = vmatpush2.bf16.msra.mxu0 0
        %894 = vmatprep.mubr.bf16.mxu0 0
        %895 = vmatmul.mubr.bf16.gmra.mxu0 %v839
        %v896 = vpop.f32.mrf.mxu0
        %v897 = vadd.f32 %v823, %v896
        %v898 = vpop.f32.mrf.mxu0
        %v899 = vpop.f32.mrf.mxu0
        %v900 = vadd.f32 %v823, %v899
        %v901 = vpop.f32.mrf.mxu0
        %902 = vmatprep.mubr.bf16.mxu0 0
        %903 = vmatmul.mubr.bf16.gmra.mxu0 %v842
        %v904 = vpop.f32.mrf.mxu0
        %v905 = vadd.f32 %v823, %v904
        %v906 = vpop.f32.mrf.mxu0
        %v907 = vpop.f32.mrf.mxu0
        %v908 = vadd.f32 %v823, %v907
        %v909 = vpop.f32.mrf.mxu0
        %910 = vmatprep.mubr.bf16.mxu0 0
        %911 = vmatmul.mubr.bf16.gmra.mxu0 %v845
        %v912 = vpop.f32.mrf.mxu0
        %v913 = vadd.f32 %v823, %v912
        %v914 = vpop.f32.mrf.mxu0
        %v915 = vpop.f32.mrf.mxu0
        %v916 = vadd.f32 %v823, %v915
        %v917 = vpop.f32.mrf.mxu0
        %918 = vmatprep.mubr.bf16.mxu0 0
        %919 = vmatmul.mubr.bf16.gmra.mxu0 %v848
        %v920 = vpop.f32.mrf.mxu0
        %v921 = vadd.f32 %v823, %v920
        %v922 = vpop.f32.mrf.mxu0
        %v923 = vpop.f32.mrf.mxu0
        %v924 = vadd.f32 %v823, %v923
        %v925 = vpop.f32.mrf.mxu0
        %926 = vmatprep.mubr.bf16.mxu0 0
        %927 = vmatmul.mubr.bf16.gmra.mxu0 %v851
        %v928 = vpop.f32.mrf.mxu0
        %v929 = vadd.f32 %v823, %v928
        %v930 = vpop.f32.mrf.mxu0
        %v931 = vpop.f32.mrf.mxu0
        %v932 = vadd.f32 %v823, %v931
        %v933 = vpop.f32.mrf.mxu0
        %934 = vmatprep.mubr.bf16.mxu0 0
        %935 = vmatmul.mubr.bf16.gmra.mxu0 %v854
        %v936 = vpop.f32.mrf.mxu0
        %v937 = vadd.f32 %v823, %v936
        %v938 = vpop.f32.mrf.mxu0
        %v939 = vpop.f32.mrf.mxu0
        %v940 = vadd.f32 %v823, %v939
        %v941 = vpop.f32.mrf.mxu0
        %942 = vmatprep.mubr.bf16.mxu0 0
        %943 = vmatmul.mubr.bf16.gmra.mxu0 %v857
        %v944 = vpop.f32.mrf.mxu0
        %v945 = vadd.f32 %v823, %v944
        %v946 = vpop.f32.mrf.mxu0
        %v947 = vpop.f32.mrf.mxu0
        %v948 = vadd.f32 %v823, %v947
        %v949 = vpop.f32.mrf.mxu0
        %950 = vmatprep.mubr.bf16.mxu0 0
        %951 = vmatmul.mubr.bf16.gmra.mxu0 %v860
        %v952 = vpop.f32.mrf.mxu0
        %v953 = vadd.f32 %v823, %v952
        %v954 = vpop.f32.mrf.mxu0
        %v955 = vpop.f32.mrf.mxu0
        %v956 = vadd.f32 %v823, %v955
        %v957 = vpop.f32.mrf.mxu0
        %958 = vdwg.mxu0
        %959 = vst [vmem:[%s218] sm:$0xff] %v897
        %960 = vst [vmem:[%s218 + $0x8] sm:$0xff] %v900
        %961 = vst [vmem:[%s218 + $0x10] sm:$0xff] %v905
        %962 = vst [vmem:[%s218 + $0x18] sm:$0xff] %v908
        %963 = vst [vmem:[%s218 + $0x20] sm:$0xff] %v913
        %964 = vst [vmem:[%s218 + $0x28] sm:$0xff] %v916
        %965 = vst [vmem:[%s218 + $0x30] sm:$0xff] %v921
        %966 = vst [vmem:[%s218 + $0x38] sm:$0xff] %v924
        %967 = vst [vmem:[%s218 + $0x40] sm:$0xff] %v929
        %968 = vst [vmem:[%s218 + $0x48] sm:$0xff] %v932
        %969 = vst [vmem:[%s218 + $0x50] sm:$0xff] %v937
        %970 = vst [vmem:[%s218 + $0x58] sm:$0xff] %v940
        %971 = vst [vmem:[%s218 + $0x60] sm:$0xff] %v945
        %972 = vst [vmem:[%s218 + $0x68] sm:$0xff] %v948
        %973 = vst [vmem:[%s218 + $0x70] sm:$0xff] %v953
        %974 = vst [vmem:[%s218 + $0x78] sm:$0xff] %v956
        %s975 = sand.u32 %s137, 1
        %s976 = scalar_lea.sflag [#allocation3], %s975
        %s977 = sand.u32 %s137, 1
        %s978 = smul.addr %s977, 128
        %s979 = scalar_lea.vmem [#allocation2], %s978
        // Predicated region
        $region41: #{tpu_custom_call.1} parent=39 // pred_check
          %p980 = pneg %p147
        $region42: #{tpu_custom_call.1} parent=39 // pred_check_branch
          %982 = sbr.rel (%p980) target = $region44
        $region43: #{tpu_custom_call.1} parent=39 // pred_region
          %s983 = smul.u32 16, %s19
          %s985 = ssub.s32 2048, 2048
          %986 = vsyncadd %s976, %s985
          %s987 = smul.addr %s983, 128
          %s988 = scalar_lea.hbm %s5, %s987
          %s989 = sshll.u32 %s979, 4
          %s990 = int_to_ptr.vmem [resolvable:$true] %s989
          %995 = dma.vmem_to_hbm [thread:$0]  %s990, 2048, %s988, %s976, 128, 128, 8
        $region44: #{tpu_custom_call.1} parent=39 // pred_fallthru
          _
      $region40: #{tpu_custom_call.1} parent=5 // pred_fallthru
        _
      %p996 = scmp.le.s32.totalorder 2, %s14
      // Predicated region
      $region45: #{tpu_custom_call.1} parent=5 // pred_check
        %p997 = pneg %p996
      $region46: #{tpu_custom_call.1} parent=5 // pred_check_branch
        %999 = sbr.rel (%p997) target = $region48
      $region47: #{tpu_custom_call.1} parent=5 // pred_region
        %s1000 = ssub.s32 %s14, 2
        // Predicated region
        $region49: #{tpu_custom_call.1} parent=47 // pred_check
          %p1001 = pneg %p153
        $region50: #{tpu_custom_call.1} parent=47 // pred_check_branch
          %1003 = sbr.rel (%p1001) target = $region52
        $region51: #{tpu_custom_call.1} parent=47 // pred_region
          %s1004 = sand.u32 %s138, 1
          %s1005 = scalar_lea.sflag [#allocation3], %s1004
          %s1006 = sand.u32 %s138, 1
          %s1007 = smul.addr %s1006, 128
          %s1008 = scalar_lea.vmem [#allocation2], %s1007
          %1009 = dma.done %s1005, 2048
        $region52: #{tpu_custom_call.1} parent=47 // pred_fallthru
          _
      $region48: #{tpu_custom_call.1} parent=5 // pred_fallthru
        _
    $region6: #{tpu_custom_call.1} parent=1 // loop_footer
      %s18 = sadd.s32 1, %s14
    $region7: #{tpu_custom_call.1} parent=1 // loop_footer_branch
      %13 = sbr.rel target = $region3
    $region8: #{tpu_custom_call.1} parent=1 // loop_exit
      _
    %1010 = vsyncpa [#allocation3], 1
    %s1011 = scalar_lea.sflag [#allocation3], 1
    %1012 = vsyncpa %s1011, 1

</llo_original>
